<compile_context>
chip_gen: v5e
topology: v5e:2x2
jax: 0.10.0
libtpu: 0.0.40
codegen_flags: <defaults>
</compile_context>

<pallas_src>
import math
import jax
import jax.numpy as jnp
from jax.experimental import pallas as pl
from jax.experimental.pallas import tpu as pltpu

LANE = 128
SUBLANE = 8
HIDDEN = 36


def _round_up(x, m):
    return ((x + m - 1) // m) * m


def _cdiv(a, b):
    return (a + b - 1) // b


def _choose_batch_tile(B, block_b):
    """Batch tile: multiple of 8, capped at block_b, and (when possible) chosen so
    the grid has at least 2 steps -> 'parallel' can shard across v7x's two TCs."""
    block_b = max(SUBLANE, _round_up(block_b, SUBLANE))
    bp_min = _round_up(B, SUBLANE)
    if bp_min < 2 * SUBLANE:
        return bp_min  # too small to split; single grid step
    n_steps = 2 * _cdiv(bp_min, 2 * block_b)          # even number of steps
    return _round_up(_cdiv(bp_min, n_steps), SUBLANE)


def dqn_kernel(x_ref, w1_ref, b1_ref, w2_ref, b2_ref, w3_ref, b3_ref, o_ref):
    x = x_ref[...]
    h1 = jnp.dot(x, w1_ref[...], preferred_element_type=jnp.float32) + b1_ref[...]
    h1 = jnp.maximum(h1, 0.0)
    h2 = jnp.dot(h1, w2_ref[...], preferred_element_type=jnp.float32) + b2_ref[...]
    h2 = jnp.maximum(h2, 0.0)
    out = jnp.dot(h2, w3_ref[...], preferred_element_type=jnp.float32) + b3_ref[...]
    o_ref[...] = out.astype(o_ref.dtype)


def pad_dqn_params(params):
    """Pad the hidden lane dims to 128 ONCE (hoisted out of the per-call path).
    K dim of layer 1 stays at the true feature count F; output lanes stay at the
    true action count O. Zero padding is exact under linear + ReLU."""
    w1, b1, w2, b2, w3, b3 = params
    F, H1 = w1.shape
    H2 = w2.shape[1]
    O = w3.shape[1]
    H1p = _round_up(H1, LANE)
    H2p = _round_up(H2, LANE)

    def pad_to(a, rows, cols):
        a = a.astype(jnp.float32)
        return jnp.pad(a, ((0, rows - a.shape[0]), (0, cols - a.shape[1])))

    padded = (
        pad_to(w1, F, H1p),   pad_to(b1, 1, H1p),
        pad_to(w2, H1p, H2p), pad_to(b2, 1, H2p),
        pad_to(w3, H2p, O),   pad_to(b3, 1, O),
    )
    dims = (F, H1, H2, O)  # true dims, for the cost estimate
    return padded, dims


def dqn_forward(x, padded_params, dims, *, block_b=2048):
    """Pallas DQN forward. x: [B, F] f32; padded_params/dims from pad_dqn_params."""
    w1p, b1p, w2p, b2p, w3p, b3p = padded_params
    F_true, H1, H2, O_true = dims
    B, F = x.shape
    assert F == w1p.shape[0], "feature dim mismatch with padded params"
    O = w3p.shape[1]

    if x.dtype != jnp.float32:
        x = x.astype(jnp.float32)

    TB = _choose_batch_tile(B, block_b)
    Bp = _round_up(B, TB)
    if Bp != B:
        x = jnp.pad(x, ((0, Bp - B), (0, 0)))  # batch-only pad (rare / small)

    grid = (Bp // TB,)

    def resident(shape):
        # Same block for every grid step -> stays VMEM-resident, no re-DMA.
        return pl.BlockSpec(shape, lambda i: (0, 0))

    # Advisory cost estimate with the TRUE (unpadded) dims.
    flops = 2 * B * (F_true * H1 + H1 * H2 + H2 * O_true)
    bytes_accessed = 4 * (
        B * F_true + B * O_true                       # activations in/out
        + F_true * H1 + H1 * H2 + H2 * O_true         # weights
        + H1 + H2 + O_true                            # biases
    )

    out_padded = pl.pallas_call(
        dqn_kernel,
        out_shape=jax.ShapeDtypeStruct((Bp, O), jnp.float32),
        grid=grid,
        in_specs=[
            # x: batch-tiled; last dim equals full array dim (no lane padding).
            pl.BlockSpec((TB, F), lambda i: (i, 0)),
            resident(w1p.shape), resident(b1p.shape),
            resident(w2p.shape), resident(b2p.shape),
            resident(w3p.shape), resident(b3p.shape),
        ],
        out_specs=pl.BlockSpec((TB, O), lambda i: (i, 0)),
        compiler_params=pltpu.CompilerParams(
            dimension_semantics=("parallel",)),
        cost_estimate=pl.CostEstimate(
            flops=flops, transcendentals=0, bytes_accessed=bytes_accessed),
    )(x, w1p, b1p, w2p, b2p, w3p, b3p)

    return out_padded[:B]


def init_dqn_params(key, input_size, output_size, hidden=HIDDEN):
    """Deterministic init mimicking nn.Linear's U(-1/sqrt(fan_in), 1/sqrt(fan_in)).
    Weights are stored [in, out] (transposed vs. PyTorch) so x @ W + b == x @ W_pt.T + b."""
    keys = jax.random.split(key, 6)
    dims = [(input_size, hidden), (hidden, hidden), (hidden, output_size)]
    params = []
    for i, (fan_in, fan_out) in enumerate(dims):
        bound = 1.0 / math.sqrt(fan_in)
        w = jax.random.uniform(keys[2 * i], (fan_in, fan_out),
                               minval=-bound, maxval=bound, dtype=jnp.float32)
        b = jax.random.uniform(keys[2 * i + 1], (1, fan_out),
                               minval=-bound, maxval=bound, dtype=jnp.float32)
        params.extend([w, b])
    return tuple(params)


def dqn_reference(x, params):
    """Pure-JAX reference of the same forward pass."""
    w1, b1, w2, b2, w3, b3 = params
    h1 = jnp.maximum(x @ w1 + b1, 0.0)
    h2 = jnp.maximum(h1 @ w2 + b2, 0.0)
    return h2 @ w3 + b3


if __name__ == "__main__":
    key = jax.random.PRNGKey(0)
    k_x, k_p, k_x2 = jax.random.split(key, 3)

    input_size = 16
    output_size = 4
    raw_params = init_dqn_params(k_p, input_size, output_size)
    # Pad params ONCE; every forward call reuses the padded copies.
    padded_params, dims = pad_dqn_params(raw_params)

    # Small, module-consistent case (replay-buffer mini-batch).
    batch = 8
    x = jax.random.normal(k_x, (batch, input_size), dtype=jnp.float32)
    out = jax.block_until_ready(dqn_forward(x, padded_params, dims))
    ref = dqn_reference(x, raw_params)
    assert out.shape == (batch, output_size)
    assert jnp.allclose(out, ref, atol=1e-5, rtol=1e-5), "mismatch vs reference (B=8)"

    # Larger, non-divisible batch: exercises the multi-step grid (>=2 steps -> both
    # TCs on v7x), batch padding and row-slice path.
    batch2 = 600
    x2 = jax.random.normal(k_x2, (batch2, input_size), dtype=jnp.float32)
    out2 = jax.block_until_ready(dqn_forward(x2, padded_params, dims))
    ref2 = dqn_reference(x2, raw_params)
    assert out2.shape == (batch2, output_size)
    assert jnp.allclose(out2, ref2, atol=1e-5, rtol=1e-5), "mismatch vs reference (B=600)"

    print("KERNEL_OK")
</pallas_src>

<mosaic_0001>
module attributes {stable_mosaic.version = 11 : i64} {
  func.func @dqn_kernel(%arg0: i32, %arg1: memref<8x16xf32, #tpu.memory_space<vmem>>, %arg2: memref<16x128xf32, #tpu.memory_space<vmem>>, %arg3: memref<1x128xf32, #tpu.memory_space<vmem>>, %arg4: memref<128x128xf32, #tpu.memory_space<vmem>>, %arg5: memref<1x128xf32, #tpu.memory_space<vmem>>, %arg6: memref<128x4xf32, #tpu.memory_space<vmem>>, %arg7: memref<1x4xf32, #tpu.memory_space<vmem>>, %arg8: memref<8x4xf32, #tpu.memory_space<vmem>>) attributes {dimension_semantics = [#tpu.dimension_semantics<parallel>], iteration_bounds = array<i64: 1>, scalar_prefetch = 0 : i64, scratch_operands = 0 : i64, tpu.core_type = #tpu.core_type<tc>, window_params = [{transform_indices = @transform_0, window_bounds = array<i64: 8, 16>}, {pipeline_mode = #tpu.pipeline_mode<synchronous>, transform_indices = @transform_1, window_bounds = array<i64: 16, 128>}, {pipeline_mode = #tpu.pipeline_mode<synchronous>, transform_indices = @transform_2, window_bounds = array<i64: 1, 128>}, {pipeline_mode = #tpu.pipeline_mode<synchronous>, transform_indices = @transform_3, window_bounds = array<i64: 128, 128>}, {pipeline_mode = #tpu.pipeline_mode<synchronous>, transform_indices = @transform_4, window_bounds = array<i64: 1, 128>}, {pipeline_mode = #tpu.pipeline_mode<synchronous>, transform_indices = @transform_5, window_bounds = array<i64: 128, 4>}, {pipeline_mode = #tpu.pipeline_mode<synchronous>, transform_indices = @transform_6, window_bounds = array<i64: 1, 4>}, {transform_indices = @transform_7, window_bounds = array<i64: 8, 4>}]} {
    %c0 = arith.constant 0 : index
    %c0_0 = arith.constant 0 : index
    %0 = vector.load %arg1[%c0, %c0_0] : memref<8x16xf32, #tpu.memory_space<vmem>>, vector<8x16xf32>
    %c0_1 = arith.constant 0 : index
    %c0_2 = arith.constant 0 : index
    %1 = vector.load %arg2[%c0_1, %c0_2] : memref<16x128xf32, #tpu.memory_space<vmem>>, vector<16x128xf32>
    %cst = arith.constant dense<0.000000e+00> : vector<8x128xf32>
    %2 = tpu.matmul %0, %1, %cst {dimension_numbers = #tpu.dot_dimension_numbers<[1], [0], [0], [1], [0, 0, 1, 1], [], []>} : vector<8x16xf32>, vector<16x128xf32>, vector<8x128xf32> -> vector<8x128xf32>
    %c0_3 = arith.constant 0 : index
    %c0_4 = arith.constant 0 : index
    %3 = vector.load %arg3[%c0_3, %c0_4] : memref<1x128xf32, #tpu.memory_space<vmem>>, vector<1x128xf32>
    %4 = vector.broadcast %3 : vector<1x128xf32> to vector<8x128xf32>
    %5 = arith.addf %2, %4 : vector<8x128xf32>
    %cst_5 = arith.constant 0.000000e+00 : f32
    %6 = vector.broadcast %cst_5 : f32 to vector<8x128xf32>
    %7 = arith.maximumf %5, %6 : vector<8x128xf32>
    %c0_6 = arith.constant 0 : index
    %c0_7 = arith.constant 0 : index
    %8 = vector.load %arg4[%c0_6, %c0_7] : memref<128x128xf32, #tpu.memory_space<vmem>>, vector<128x128xf32>
    %cst_8 = arith.constant dense<0.000000e+00> : vector<8x128xf32>
    %9 = tpu.matmul %7, %8, %cst_8 {dimension_numbers = #tpu.dot_dimension_numbers<[1], [0], [0], [1], [0, 0, 1, 1], [], []>} : vector<8x128xf32>, vector<128x128xf32>, vector<8x128xf32> -> vector<8x128xf32>
    %c0_9 = arith.constant 0 : index
    %c0_10 = arith.constant 0 : index
    %10 = vector.load %arg5[%c0_9, %c0_10] : memref<1x128xf32, #tpu.memory_space<vmem>>, vector<1x128xf32>
    %11 = vector.broadcast %10 : vector<1x128xf32> to vector<8x128xf32>
    %12 = arith.addf %9, %11 : vector<8x128xf32>
    %cst_11 = arith.constant 0.000000e+00 : f32
    %13 = vector.broadcast %cst_11 : f32 to vector<8x128xf32>
    %14 = arith.maximumf %12, %13 : vector<8x128xf32>
    %c0_12 = arith.constant 0 : index
    %c0_13 = arith.constant 0 : index
    %15 = vector.load %arg6[%c0_12, %c0_13] : memref<128x4xf32, #tpu.memory_space<vmem>>, vector<128x4xf32>
    %cst_14 = arith.constant dense<0.000000e+00> : vector<8x4xf32>
    %16 = tpu.matmul %14, %15, %cst_14 {dimension_numbers = #tpu.dot_dimension_numbers<[1], [0], [0], [1], [0, 0, 1, 1], [], []>} : vector<8x128xf32>, vector<128x4xf32>, vector<8x4xf32> -> vector<8x4xf32>
    %c0_15 = arith.constant 0 : index
    %c0_16 = arith.constant 0 : index
    %17 = vector.load %arg7[%c0_15, %c0_16] : memref<1x4xf32, #tpu.memory_space<vmem>>, vector<1x4xf32>
    %18 = vector.broadcast %17 : vector<1x4xf32> to vector<8x4xf32>
    %19 = arith.addf %16, %18 : vector<8x4xf32>
    %c0_17 = arith.constant 0 : index
    %c0_18 = arith.constant 0 : index
    %20 = vector.load %arg8[%c0_17, %c0_18] : memref<8x4xf32, #tpu.memory_space<vmem>>, vector<8x4xf32>
    tpu.vector_store %arg8[%c0_17, %c0_18], %19 {strides = array<i32>} : memref<8x4xf32, #tpu.memory_space<vmem>>, vector<8x4xf32>,
    return
  }
  func.func @transform_0(%arg0: i32) -> (i32, i32) {
    %c0_i32 = arith.constant 0 : i32
    %c0_i32_0 = arith.constant 0 : i32
    return %arg0, %c0_i32 : i32, i32
  }
  func.func @transform_1(%arg0: i32) -> (i32, i32) {
    %c0_i32 = arith.constant 0 : i32
    %c0_i32_0 = arith.constant 0 : i32
    %c0_i32_1 = arith.constant 0 : i32
    return %c0_i32, %c0_i32_0 : i32, i32
  }
  func.func @transform_2(%arg0: i32) -> (i32, i32) {
    %c0_i32 = arith.constant 0 : i32
    %c0_i32_0 = arith.constant 0 : i32
    %c0_i32_1 = arith.constant 0 : i32
    return %c0_i32, %c0_i32_0 : i32, i32
  }
  func.func @transform_3(%arg0: i32) -> (i32, i32) {
    %c0_i32 = arith.constant 0 : i32
    %c0_i32_0 = arith.constant 0 : i32
    %c0_i32_1 = arith.constant 0 : i32
    return %c0_i32, %c0_i32_0 : i32, i32
  }
  func.func @transform_4(%arg0: i32) -> (i32, i32) {
    %c0_i32 = arith.constant 0 : i32
    %c0_i32_0 = arith.constant 0 : i32
    %c0_i32_1 = arith.constant 0 : i32
    return %c0_i32, %c0_i32_0 : i32, i32
  }
  func.func @transform_5(%arg0: i32) -> (i32, i32) {
    %c0_i32 = arith.constant 0 : i32
    %c0_i32_0 = arith.constant 0 : i32
    %c0_i32_1 = arith.constant 0 : i32
    return %c0_i32, %c0_i32_0 : i32, i32
  }
  func.func @transform_6(%arg0: i32) -> (i32, i32) {
    %c0_i32 = arith.constant 0 : i32
    %c0_i32_0 = arith.constant 0 : i32
    %c0_i32_1 = arith.constant 0 : i32
    return %c0_i32, %c0_i32_0 : i32, i32
  }
  func.func @transform_7(%arg0: i32) -> (i32, i32) {
    %c0_i32 = arith.constant 0 : i32
    %c0_i32_0 = arith.constant 0 : i32
    return %arg0, %c0_i32 : i32, i32
  }
}

</mosaic_0001>

<llo_original>
// kernel: tpu_custom_call.1
$region0: #{tpu_custom_call.1}
  #allocation0 [shape = 'u32[]', space=smem, size = 0x4, offset = 0x4, fixed_abs, tag = 'smem constant byte address 0x4 - core index']
  #allocation1 [shape = 'u32[72,128]{1,0:T(1,128)}', space=vmem, size = 0x9000, scoped, tag = 'internal scratch']
  %s0 = inlined_call_operand.hbm [shape: f32[8,16], index: 0, kind: input, shape index: {}]
  %s1 = inlined_call_operand.hbm [shape: f32[16,128], index: 1, kind: input, shape index: {}]
  %s2 = inlined_call_operand.vmem [shape: f32[1,128], index: 2, kind: input, shape index: {}]
  %s3 = inlined_call_operand.vmem [shape: f32[128,128], index: 3, kind: input, shape index: {}]
  %s4 = inlined_call_operand.vmem [shape: f32[1,128], index: 4, kind: input, shape index: {}]
  %s5 = inlined_call_operand.vmem [shape: f32[128,4], index: 5, kind: input, shape index: {}]
  %s6 = inlined_call_operand.vmem [shape: f32[1,4], index: 6, kind: input, shape index: {}]
  %s7 = inlined_call_operand.vmem [shape: f32[8,4], index: 7, kind: output, shape index: {}]
  %s8 = sld [smem:[#allocation0]]
  $region46: #{tpu_custom_call.1} parent=0
    _
  %s10 = ssub.s32 1, %s8
  %s11 = scalar_select 0, %s10, %s8
  $region1: #{tpu_custom_call.1} parent=0
    #allocation2 [shape = 'u8[4096]{0}', space=vmem, size = 0x1000, scoped, tag = 'input window, operand 0, single buffered']
    #allocation3 [shape = 's32[1]{0}', space=sflag, size = 0x4, scoped, tag = 'scoped memory for tpu_custom_call.1']
    #allocation4 [shape = 'u8[8192]{0}', space=vmem, size = 0x2000, scoped, tag = 'input window, operand 1, single buffered']
    #allocation5 [shape = 's32[1]{0}', space=sflag, size = 0x4, scoped, tag = 'scoped memory for tpu_custom_call.1']
    %12 = vsyncpa [#allocation3], 0
    %13 = vsyncpa [#allocation5], 0
    // Predicated region
    $region2: #{tpu_custom_call.1} parent=1 // pred_check
      _
    $region3: #{tpu_custom_call.1} parent=1 // pred_check_branch
      %15 = sbr.rel (0) target = $region5
    $region4: #{tpu_custom_call.1} parent=1 // pred_region
      %17 = vsyncadd [#allocation3], 0
      %s19 = sshll.u32 %s0, 4
      %s20 = int_to_ptr.hbm [resolvable:$true] %s19
      %s21 = sshll.u32 [#allocation2], 4
      %s22 = int_to_ptr.vmem [resolvable:$true] %s21
      %24 = dma.hbm_to_vmem [thread:$0]  %s20, 128, %s22, [#allocation3]
    $region5: #{tpu_custom_call.1} parent=1 // pred_fallthru
      _
    // Predicated region
    $region6: #{tpu_custom_call.1} parent=1 // pred_check
      _
    $region7: #{tpu_custom_call.1} parent=1 // pred_check_branch
      %26 = sbr.rel (0) target = $region9
    $region8: #{tpu_custom_call.1} parent=1 // pred_region
      %28 = vsyncadd [#allocation5], 0
      %s29 = sshll.u32 %s1, 4
      %s30 = int_to_ptr.hbm [resolvable:$true] %s29
      %s31 = sshll.u32 [#allocation4], 4
      %s32 = int_to_ptr.vmem [resolvable:$true] %s31
      %37 = dma.hbm_to_vmem [thread:$0]  %s30, 256, %s32, [#allocation5], 128, 128, 8
    $region9: #{tpu_custom_call.1} parent=1 // pred_fallthru
      _
    // Predicated region
    $region10: #{tpu_custom_call.1} parent=1 // pred_check
      _
    $region11: #{tpu_custom_call.1} parent=1 // pred_check_branch
      %39 = sbr.rel (0) target = $region13
    $region12: #{tpu_custom_call.1} parent=1 // pred_region
      _
    $region13: #{tpu_custom_call.1} parent=1 // pred_fallthru
      _
    // Predicated region
    $region14: #{tpu_custom_call.1} parent=1 // pred_check
      _
    $region15: #{tpu_custom_call.1} parent=1 // pred_check_branch
      %41 = sbr.rel (0) target = $region17
    $region16: #{tpu_custom_call.1} parent=1 // pred_region
      _
    $region17: #{tpu_custom_call.1} parent=1 // pred_fallthru
      _
    // Predicated region
    $region18: #{tpu_custom_call.1} parent=1 // pred_check
      _
    $region19: #{tpu_custom_call.1} parent=1 // pred_check_branch
      %43 = sbr.rel (0) target = $region21
    $region20: #{tpu_custom_call.1} parent=1 // pred_region
      _
    $region21: #{tpu_custom_call.1} parent=1 // pred_fallthru
      _
    // Predicated region
    $region22: #{tpu_custom_call.1} parent=1 // pred_check
      _
    $region23: #{tpu_custom_call.1} parent=1 // pred_check_branch
      %45 = sbr.rel (0) target = $region25
    $region24: #{tpu_custom_call.1} parent=1 // pred_region
      _
    $region25: #{tpu_custom_call.1} parent=1 // pred_fallthru
      _
    // Predicated region
    $region26: #{tpu_custom_call.1} parent=1 // pred_check
      _
    $region27: #{tpu_custom_call.1} parent=1 // pred_check_branch
      %47 = sbr.rel (0) target = $region29
    $region28: #{tpu_custom_call.1} parent=1 // pred_region
      _
    $region29: #{tpu_custom_call.1} parent=1 // pred_fallthru
      _
    // Predicated region
    $region30: #{tpu_custom_call.1} parent=1 // pred_check
      _
    $region31: #{tpu_custom_call.1} parent=1 // pred_check_branch
      %49 = sbr.rel (0) target = $region33
    $region32: #{tpu_custom_call.1} parent=1 // pred_region
      %51 = dma.done [#allocation3], 128
    $region33: #{tpu_custom_call.1} parent=1 // pred_fallthru
      _
    // Predicated region
    $region34: #{tpu_custom_call.1} parent=1 // pred_check
      _
    $region35: #{tpu_custom_call.1} parent=1 // pred_check_branch
      %53 = sbr.rel (0) target = $region37
    $region36: #{tpu_custom_call.1} parent=1 // pred_region
      %55 = dma.done [#allocation5], 256
    $region37: #{tpu_custom_call.1} parent=1 // pred_fallthru
      _
    %v56 = vld [vmem:[#allocation2] sm:$0xff]
    %v57 = vld [vmem:[#allocation4] sm:$0xff]
    %v58 = vld [vmem:[#allocation4 + $0x8] sm:$0xff]
    %v59 = vld [vmem:[%s2] sm:$0x1]
    %v61 = vperm.slane %v59, 0
    %vm63 = vcmask 130048
    %v65 = vsel %vm63, %v56, 0
    %67 = vmatpush.msra.mxu0 0.0
    %68 = vmatpush.msra.mxu0 0.0
    %69 = vmatpush.msra.mxu0 0.0
    %70 = vmatpush.msra.mxu0 0.0
    %71 = vmatpush.msra.mxu0 0.0
    %72 = vmatpush.msra.mxu0 0.0
    %73 = vmatpush.msra.mxu0 0.0
    %74 = vmatpush.msra.mxu0 0.0
    %75 = vmatpush.msra.mxu0 0.0
    %76 = vmatpush.msra.mxu0 0.0
    %77 = vmatpush.msra.mxu0 0.0
    %78 = vmatpush.msra.mxu0 0.0
    %79 = vmatpush.msra.mxu0 0.0
    %80 = vmatpush.msra.mxu0 0.0
    %81 = vmatpush.msra.mxu0 %v58
    %82 = vmatpush.msra.mxu0 %v57
    %83 = vmatmul.f32.gmra.mxu0 %v65
    %v84 = vpop.f32.mrf.mxu0
    %v85 = vadd.f32 %v61, %v84
    %86 = vdwg.mxu0
    %v87 = vmax.f32 %v85, 0.0
    %v88 = vld [vmem:[%s3] sm:$0xff]
    %v89 = vld [vmem:[%s3 + $0x8] sm:$0xff]
    %v90 = vld [vmem:[%s3 + $0x10] sm:$0xff]
    %v91 = vld [vmem:[%s3 + $0x18] sm:$0xff]
    %v92 = vld [vmem:[%s3 + $0x20] sm:$0xff]
    %v93 = vld [vmem:[%s3 + $0x28] sm:$0xff]
    %v94 = vld [vmem:[%s3 + $0x30] sm:$0xff]
    %v95 = vld [vmem:[%s3 + $0x38] sm:$0xff]
    %v96 = vld [vmem:[%s3 + $0x40] sm:$0xff]
    %v97 = vld [vmem:[%s3 + $0x48] sm:$0xff]
    %v98 = vld [vmem:[%s3 + $0x50] sm:$0xff]
    %v99 = vld [vmem:[%s3 + $0x58] sm:$0xff]
    %v100 = vld [vmem:[%s3 + $0x60] sm:$0xff]
    %v101 = vld [vmem:[%s3 + $0x68] sm:$0xff]
    %v102 = vld [vmem:[%s3 + $0x70] sm:$0xff]
    %v103 = vld [vmem:[%s3 + $0x78] sm:$0xff]
    %v104 = vld [vmem:[%s4] sm:$0x1]
    %v106 = vperm.slane %v104, 0
    %108 = vmatpush.msra.mxu0 %v103
    %109 = vmatpush.msra.mxu0 %v102
    %110 = vmatpush.msra.mxu0 %v101
    %111 = vmatpush.msra.mxu0 %v100
    %112 = vmatpush.msra.mxu0 %v99
    %113 = vmatpush.msra.mxu0 %v98
    %114 = vmatpush.msra.mxu0 %v97
    %115 = vmatpush.msra.mxu0 %v96
    %116 = vmatpush.msra.mxu0 %v95
    %117 = vmatpush.msra.mxu0 %v94
    %118 = vmatpush.msra.mxu0 %v93
    %119 = vmatpush.msra.mxu0 %v92
    %120 = vmatpush.msra.mxu0 %v91
    %121 = vmatpush.msra.mxu0 %v90
    %122 = vmatpush.msra.mxu0 %v89
    %123 = vmatpush.msra.mxu0 %v88
    %124 = vmatmul.f32.gmra.mxu0 %v87
    %v125 = vpop.f32.mrf.mxu0
    %v126 = vadd.f32 %v106, %v125
    %127 = vdwg.mxu0
    %v128 = vmax.f32 %v126, 0.0
    %v129 = vld [vmem:[%s5] sm:$0xff]
    %v130 = vld [vmem:[%s5 + $0x8] sm:$0xff]
    %v131 = vld [vmem:[%s5 + $0x10] sm:$0xff]
    %v132 = vld [vmem:[%s5 + $0x18] sm:$0xff]
    %v133 = vld [vmem:[%s5 + $0x20] sm:$0xff]
    %v134 = vld [vmem:[%s5 + $0x28] sm:$0xff]
    %v135 = vld [vmem:[%s5 + $0x30] sm:$0xff]
    %v136 = vld [vmem:[%s5 + $0x38] sm:$0xff]
    %v137 = vld [vmem:[%s5 + $0x40] sm:$0xff]
    %v138 = vld [vmem:[%s5 + $0x48] sm:$0xff]
    %v139 = vld [vmem:[%s5 + $0x50] sm:$0xff]
    %v140 = vld [vmem:[%s5 + $0x58] sm:$0xff]
    %v141 = vld [vmem:[%s5 + $0x60] sm:$0xff]
    %v142 = vld [vmem:[%s5 + $0x68] sm:$0xff]
    %v143 = vld [vmem:[%s5 + $0x70] sm:$0xff]
    %v144 = vld [vmem:[%s5 + $0x78] sm:$0xff]
    %v145 = vld [vmem:[%s6] sm:$0x1]
    %v147 = vperm.slane %v145, 0
    %149 = vmatpush.msra.mxu0 %v144
    %150 = vmatpush.msra.mxu0 %v143
    %151 = vmatpush.msra.mxu0 %v142
    %152 = vmatpush.msra.mxu0 %v141
    %153 = vmatpush.msra.mxu0 %v140
    %154 = vmatpush.msra.mxu0 %v139
    %155 = vmatpush.msra.mxu0 %v138
    %156 = vmatpush.msra.mxu0 %v137
    %157 = vmatpush.msra.mxu0 %v136
    %158 = vmatpush.msra.mxu0 %v135
    %159 = vmatpush.msra.mxu0 %v134
    %160 = vmatpush.msra.mxu0 %v133
    %161 = vmatpush.msra.mxu0 %v132
    %162 = vmatpush.msra.mxu0 %v131
    %163 = vmatpush.msra.mxu0 %v130
    %164 = vmatpush.msra.mxu0 %v129
    %165 = vmatmul.f32.gmra.mxu0 %v128
    %v166 = vpop.f32.mrf.mxu0
    %v167 = vadd.f32 %v147, %v166
    %168 = vdwg.mxu0
    %vm169 = vcmask 31744
    %170 = vst.msk [vmem:[%s7] sm:$0xff] %vm169, %v167
    // Predicated region
    $region38: #{tpu_custom_call.1} parent=1 // pred_check
      _
    $region39: #{tpu_custom_call.1} parent=1 // pred_check_branch
      %172 = sbr.rel (0) target = $region41
    $region40: #{tpu_custom_call.1} parent=1 // pred_region
      _
    $region41: #{tpu_custom_call.1} parent=1 // pred_fallthru
      _
    // Predicated region
    $region42: #{tpu_custom_call.1} parent=1 // pred_check
      _
    $region43: #{tpu_custom_call.1} parent=1 // pred_check_branch
      %174 = sbr.rel (0) target = $region45
    $region44: #{tpu_custom_call.1} parent=1 // pred_region
      _
    $region45: #{tpu_custom_call.1} parent=1 // pred_fallthru
      _
    %175 = vsyncpa [#allocation3], 1
    %176 = vsyncpa [#allocation5], 1

</llo_original>
